<compile_context>
chip_gen: v7x
topology: tpu7x:2x2x1
jax: 0.10.0
libtpu: 0.0.40
codegen_flags: <defaults>
</compile_context>

<pallas_src>
import functools

import jax
import jax.numpy as jnp
from jax.experimental import pallas as pl
from jax.experimental.pallas import tpu as pltpu

LANE = 128


def _round_up(x, m):
    return (x + m - 1) // m * m


def _actor_kernel(x_ref, w1_ref, b1_ref, w2_ref, b2_ref, w3_ref, b3_ref,
                  w4_ref, b4_ref, out_ref):
    wdt = w1_ref.dtype  # matmul-operand dtype (bf16 by default, f32 supported)

    # Cast observations to the matmul dtype inside the kernel (keeps the HBM
    # input f32 and avoids a per-call XLA cast op).
    h = x_ref[...].astype(wdt)

    # Layer 1: Linear + ReLU  (f32 accumulate, f32 elementwise)
    h = jnp.dot(h, w1_ref[...], preferred_element_type=jnp.float32) + b1_ref[...]
    h = jnp.maximum(h, 0.0).astype(wdt)

    # Layer 2: Linear + ReLU
    h = jnp.dot(h, w2_ref[...], preferred_element_type=jnp.float32) + b2_ref[...]
    h = jnp.maximum(h, 0.0).astype(wdt)

    # Layer 3: Linear + ReLU
    h = jnp.dot(h, w3_ref[...], preferred_element_type=jnp.float32) + b3_ref[...]
    h = jnp.maximum(h, 0.0).astype(wdt)

    # SoftmaxPolicy: Linear -> softmax over the (padded) action dim.
    # Padded lanes carry a -1e30 f32 bias -> exp() == 0 -> zero probability.
    logits = jnp.dot(h, w4_ref[...], preferred_element_type=jnp.float32) + b4_ref[...]
    m = jnp.max(logits, axis=-1, keepdims=True)
    e = jnp.exp(logits - m)
    denom = jnp.sum(e, axis=-1, keepdims=True)
    out_ref[...] = (e * pl.reciprocal(denom, approx=True)).astype(out_ref.dtype)


def prepare_actor_params(params, dot_dtype=jnp.bfloat16):
    """One-time (outside the forward path) padding + casting of the weights.

    Returns (padded_params, action_dim). Weights are stored (in, out) so the
    kernel computes y = x @ W + b. Hidden/action dims are padded to multiples
    of 128; weights are cast to `dot_dtype`; biases stay f32 (so the -1e30 pad
    bias on the action logits is exact).
    """
    w1, b1, w2, b2, w3, b3, w4, b4 = params
    h_dim = w1.shape[1]
    action_dim = w4.shape[1]
    Hp = _round_up(h_dim, LANE)
    Ap = _round_up(action_dim, LANE)

    w1p = jnp.pad(w1, ((0, 0), (0, Hp - h_dim))).astype(dot_dtype)
    b1p = jnp.pad(b1, ((0, 0), (0, Hp - h_dim))).astype(jnp.float32)
    w2p = jnp.pad(w2, ((0, Hp - h_dim), (0, Hp - h_dim))).astype(dot_dtype)
    b2p = jnp.pad(b2, ((0, 0), (0, Hp - h_dim))).astype(jnp.float32)
    w3p = jnp.pad(w3, ((0, Hp - h_dim), (0, Hp - h_dim))).astype(dot_dtype)
    b3p = jnp.pad(b3, ((0, 0), (0, Hp - h_dim))).astype(jnp.float32)
    w4p = jnp.pad(w4, ((0, Hp - h_dim), (0, Ap - action_dim))).astype(dot_dtype)
    b4p = jnp.pad(b4, ((0, 0), (0, Ap - action_dim)),
                  constant_values=-1e30).astype(jnp.float32)

    padded = (w1p, b1p, w2p, b2p, w3p, b3p, w4p, b4p)
    return padded, action_dim


@functools.partial(
    jax.jit, static_argnames=("action_dim", "block_b", "out_dtype", "unpad"))
def actor_forward(s, padded_params, *, action_dim, block_b=512,
                  out_dtype=jnp.bfloat16, unpad=True):
    """s: (B, obs_dim) f32 -> action probabilities.

    unpad=True  -> (B, action_dim) in out_dtype.
    unpad=False -> padded (Bp, 128) probs (padded lanes exactly 0), no slice op.
    """
    w1p, b1p, w2p, b2p, w3p, b3p, w4p, b4p = padded_params
    assert block_b % 16 == 0

    B, obs_dim = s.shape
    Hp = w1p.shape[1]
    Ap = w4p.shape[1]

    # f32 intermediates at (512,128) would fill the register file -> spills;
    # only allow the larger batch tile for bf16 weights/intermediates.
    if w1p.dtype == jnp.float32:
        block_b = min(block_b, 256)

    # Batch tile: multiple of 16 (bf16 packs 16 sublanes/vreg). For B > 16 make
    # the grid have >=2 steps so the "parallel" batch axis can shard across the
    # two v7x TensorCores.
    B16 = _round_up(B, 16)
    if B16 <= 16:
        TB = B16
    else:
        TB = min(block_b, _round_up(pl.cdiv(B16, 2), 16))
    Bp = _round_up(B, TB)
    if Bp != B:
        s = jnp.pad(s, ((0, Bp - B), (0, 0)))

    grid = (Bp // TB,)

    def _const2(i):
        return (0, 0)

    in_specs = [
        pl.BlockSpec((TB, obs_dim), lambda i: (i, 0)),   # activations: batch-tiled
        pl.BlockSpec((obs_dim, Hp), _const2),            # weights/biases: VMEM-resident
        pl.BlockSpec((1, Hp), _const2),
        pl.BlockSpec((Hp, Hp), _const2),
        pl.BlockSpec((1, Hp), _const2),
        pl.BlockSpec((Hp, Hp), _const2),
        pl.BlockSpec((1, Hp), _const2),
        pl.BlockSpec((Hp, Ap), _const2),
        pl.BlockSpec((1, Ap), _const2),
    ]
    out_spec = pl.BlockSpec((TB, Ap), lambda i: (i, 0))

    probs = pl.pallas_call(
        _actor_kernel,
        out_shape=jax.ShapeDtypeStruct((Bp, Ap), out_dtype),
        grid=grid,
        in_specs=in_specs,
        out_specs=out_spec,
        compiler_params=pltpu.CompilerParams(
            dimension_semantics=("parallel",)),
    )(s, w1p, b1p, w2p, b2p, w3p, b3p, w4p, b4p)

    if unpad:
        probs = probs[:B, :action_dim]
    return probs


def init_actor_params(key, obs_dim, action_dim, h_dim):
    """Deterministic init mirroring PyTorch's default Linear init
    (uniform in +-1/sqrt(fan_in)), weights stored as (in, out), f32."""
    dims = [(obs_dim, h_dim), (h_dim, h_dim), (h_dim, h_dim), (h_dim, action_dim)]
    params = []
    for (fan_in, fan_out) in dims:
        key, kw, kb = jax.random.split(key, 3)
        bound = 1.0 / jnp.sqrt(jnp.float32(fan_in))
        w = jax.random.uniform(kw, (fan_in, fan_out), jnp.float32, -bound, bound)
        # bias kept 2D (1, fan_out) for clean TPU broadcasting inside the kernel
        b = jax.random.uniform(kb, (1, fan_out), jnp.float32, -bound, bound)
        params += [w, b]
    return tuple(params)


if __name__ == "__main__":
    obs_dim, action_dim, h_dim = 16, 8, 100   # matches Actor's h_dim=100 default
    batch = 8

    key = jax.random.PRNGKey(0)
    key, k_s = jax.random.split(key)
    s = jax.random.normal(k_s, (batch, obs_dim), jnp.float32)
    params = init_actor_params(key, obs_dim, action_dim, h_dim)

    # One-time weight prep (bf16 matmul operands, padded to 128 lanes).
    padded_params, adim = prepare_actor_params(params, dot_dtype=jnp.bfloat16)

    probs = actor_forward(s, padded_params, action_dim=adim)
    jax.block_until_ready(probs)
    assert probs.shape == (batch, action_dim)

    # Reference in plain f32 JAX. Tolerances account for bf16 matmul operands,
    # bf16 output dtype and the approx (EUP) reciprocal in the softmax.
    w1, b1, w2, b2, w3, b3, w4, b4 = params
    h = jnp.maximum(s @ w1 + b1, 0.0)
    h = jnp.maximum(h @ w2 + b2, 0.0)
    h = jnp.maximum(h @ w3 + b3, 0.0)
    ref = jax.nn.softmax(h @ w4 + b4, axis=-1)

    probs_f32 = probs.astype(jnp.float32)
    assert jnp.max(jnp.abs(probs_f32 - ref)) < 2e-2, "mismatch vs f32 reference"
    assert jnp.max(jnp.abs(jnp.sum(probs_f32, axis=-1) - 1.0)) < 1e-2, "rows not normalized"

    print("KERNEL_OK")
</pallas_src>

<mosaic_0001>
module attributes {stable_mosaic.version = 11 : i64} {
  func.func @_actor_kernel(%arg0: i32, %arg1: memref<16x16xf32, #tpu.memory_space<vmem>>, %arg2: memref<16x128xbf16, #tpu.memory_space<vmem>>, %arg3: memref<1x128xf32, #tpu.memory_space<vmem>>, %arg4: memref<128x128xbf16, #tpu.memory_space<vmem>>, %arg5: memref<1x128xf32, #tpu.memory_space<vmem>>, %arg6: memref<128x128xbf16, #tpu.memory_space<vmem>>, %arg7: memref<1x128xf32, #tpu.memory_space<vmem>>, %arg8: memref<128x128xbf16, #tpu.memory_space<vmem>>, %arg9: memref<1x128xf32, #tpu.memory_space<vmem>>, %arg10: memref<16x128xbf16, #tpu.memory_space<vmem>>) attributes {dimension_semantics = [#tpu.dimension_semantics<parallel>], iteration_bounds = array<i64: 1>, scalar_prefetch = 0 : i64, scratch_operands = 0 : i64, tpu.core_type = #tpu.core_type<tc>, window_params = [{transform_indices = @transform_0, window_bounds = array<i64: 16, 16>}, {pipeline_mode = #tpu.pipeline_mode<synchronous>, transform_indices = @transform_1, window_bounds = array<i64: 16, 128>}, {pipeline_mode = #tpu.pipeline_mode<synchronous>, transform_indices = @transform_2, window_bounds = array<i64: 1, 128>}, {pipeline_mode = #tpu.pipeline_mode<synchronous>, transform_indices = @transform_3, window_bounds = array<i64: 128, 128>}, {pipeline_mode = #tpu.pipeline_mode<synchronous>, transform_indices = @transform_4, window_bounds = array<i64: 1, 128>}, {pipeline_mode = #tpu.pipeline_mode<synchronous>, transform_indices = @transform_5, window_bounds = array<i64: 128, 128>}, {pipeline_mode = #tpu.pipeline_mode<synchronous>, transform_indices = @transform_6, window_bounds = array<i64: 1, 128>}, {pipeline_mode = #tpu.pipeline_mode<synchronous>, transform_indices = @transform_7, window_bounds = array<i64: 128, 128>}, {pipeline_mode = #tpu.pipeline_mode<synchronous>, transform_indices = @transform_8, window_bounds = array<i64: 1, 128>}, {transform_indices = @transform_9, window_bounds = array<i64: 16, 128>}]} {
    %c0 = arith.constant 0 : index
    %c0_0 = arith.constant 0 : index
    %0 = vector.load %arg1[%c0, %c0_0] : memref<16x16xf32, #tpu.memory_space<vmem>>, vector<16x16xf32>
    %1 = arith.truncf %0 : vector<16x16xf32> to vector<16x16xbf16>
    %c0_1 = arith.constant 0 : index
    %c0_2 = arith.constant 0 : index
    %2 = vector.load %arg2[%c0_1, %c0_2] : memref<16x128xbf16, #tpu.memory_space<vmem>>, vector<16x128xbf16>
    %cst = arith.constant dense<0.000000e+00> : vector<16x128xf32>
    %3 = tpu.matmul %1, %2, %cst {dimension_numbers = #tpu.dot_dimension_numbers<[1], [0], [0], [1], [0, 0, 1, 1], [], []>} : vector<16x16xbf16>, vector<16x128xbf16>, vector<16x128xf32> -> vector<16x128xf32>
    %c0_3 = arith.constant 0 : index
    %c0_4 = arith.constant 0 : index
    %4 = vector.load %arg3[%c0_3, %c0_4] : memref<1x128xf32, #tpu.memory_space<vmem>>, vector<1x128xf32>
    %5 = vector.broadcast %4 : vector<1x128xf32> to vector<16x128xf32>
    %6 = arith.addf %3, %5 : vector<16x128xf32>
    %cst_5 = arith.constant 0.000000e+00 : f32
    %7 = vector.broadcast %cst_5 : f32 to vector<16x128xf32>
    %8 = arith.maximumf %6, %7 : vector<16x128xf32>
    %9 = arith.truncf %8 : vector<16x128xf32> to vector<16x128xbf16>
    %c0_6 = arith.constant 0 : index
    %c0_7 = arith.constant 0 : index
    %10 = vector.load %arg4[%c0_6, %c0_7] : memref<128x128xbf16, #tpu.memory_space<vmem>>, vector<128x128xbf16>
    %cst_8 = arith.constant dense<0.000000e+00> : vector<16x128xf32>
    %11 = tpu.matmul %9, %10, %cst_8 {dimension_numbers = #tpu.dot_dimension_numbers<[1], [0], [0], [1], [0, 0, 1, 1], [], []>} : vector<16x128xbf16>, vector<128x128xbf16>, vector<16x128xf32> -> vector<16x128xf32>
    %c0_9 = arith.constant 0 : index
    %c0_10 = arith.constant 0 : index
    %12 = vector.load %arg5[%c0_9, %c0_10] : memref<1x128xf32, #tpu.memory_space<vmem>>, vector<1x128xf32>
    %13 = vector.broadcast %12 : vector<1x128xf32> to vector<16x128xf32>
    %14 = arith.addf %11, %13 : vector<16x128xf32>
    %cst_11 = arith.constant 0.000000e+00 : f32
    %15 = vector.broadcast %cst_11 : f32 to vector<16x128xf32>
    %16 = arith.maximumf %14, %15 : vector<16x128xf32>
    %17 = arith.truncf %16 : vector<16x128xf32> to vector<16x128xbf16>
    %c0_12 = arith.constant 0 : index
    %c0_13 = arith.constant 0 : index
    %18 = vector.load %arg6[%c0_12, %c0_13] : memref<128x128xbf16, #tpu.memory_space<vmem>>, vector<128x128xbf16>
    %cst_14 = arith.constant dense<0.000000e+00> : vector<16x128xf32>
    %19 = tpu.matmul %17, %18, %cst_14 {dimension_numbers = #tpu.dot_dimension_numbers<[1], [0], [0], [1], [0, 0, 1, 1], [], []>} : vector<16x128xbf16>, vector<128x128xbf16>, vector<16x128xf32> -> vector<16x128xf32>
    %c0_15 = arith.constant 0 : index
    %c0_16 = arith.constant 0 : index
    %20 = vector.load %arg7[%c0_15, %c0_16] : memref<1x128xf32, #tpu.memory_space<vmem>>, vector<1x128xf32>
    %21 = vector.broadcast %20 : vector<1x128xf32> to vector<16x128xf32>
    %22 = arith.addf %19, %21 : vector<16x128xf32>
    %cst_17 = arith.constant 0.000000e+00 : f32
    %23 = vector.broadcast %cst_17 : f32 to vector<16x128xf32>
    %24 = arith.maximumf %22, %23 : vector<16x128xf32>
    %25 = arith.truncf %24 : vector<16x128xf32> to vector<16x128xbf16>
    %c0_18 = arith.constant 0 : index
    %c0_19 = arith.constant 0 : index
    %26 = vector.load %arg8[%c0_18, %c0_19] : memref<128x128xbf16, #tpu.memory_space<vmem>>, vector<128x128xbf16>
    %cst_20 = arith.constant dense<0.000000e+00> : vector<16x128xf32>
    %27 = tpu.matmul %25, %26, %cst_20 {dimension_numbers = #tpu.dot_dimension_numbers<[1], [0], [0], [1], [0, 0, 1, 1], [], []>} : vector<16x128xbf16>, vector<128x128xbf16>, vector<16x128xf32> -> vector<16x128xf32>
    %c0_21 = arith.constant 0 : index
    %c0_22 = arith.constant 0 : index
    %28 = vector.load %arg9[%c0_21, %c0_22] : memref<1x128xf32, #tpu.memory_space<vmem>>, vector<1x128xf32>
    %29 = vector.broadcast %28 : vector<1x128xf32> to vector<16x128xf32>
    %30 = arith.addf %27, %29 : vector<16x128xf32>
    %cst_23 = arith.constant dense<0xFF800000> : vector<16xf32>
    %31 = vector.multi_reduction <maximumf>, %30, %cst_23 [1] : vector<16x128xf32> to vector<16xf32>
    %32 = vector.shape_cast %31 : vector<16xf32> to vector<16x1xf32>
    %33 = vector.broadcast %32 : vector<16x1xf32> to vector<16x128xf32>
    %34 = arith.subf %30, %33 : vector<16x128xf32>
    %35 = math.exp %34 : vector<16x128xf32>
    %cst_24 = arith.constant dense<0.000000e+00> : vector<16xf32>
    %36 = vector.multi_reduction <add>, %35, %cst_24 [1] : vector<16x128xf32> to vector<16xf32>
    %37 = vector.shape_cast %36 : vector<16xf32> to vector<16x1xf32>
    %38 = tpu.reciprocal %37 {approx = true} : vector<16x1xf32> -> vector<16x1xf32>
    %39 = vector.broadcast %38 : vector<16x1xf32> to vector<16x128xf32>
    %40 = arith.mulf %35, %39 : vector<16x128xf32>
    %41 = arith.truncf %40 : vector<16x128xf32> to vector<16x128xbf16>
    %c0_25 = arith.constant 0 : index
    %c0_26 = arith.constant 0 : index
    %42 = vector.load %arg10[%c0_25, %c0_26] : memref<16x128xbf16, #tpu.memory_space<vmem>>, vector<16x128xbf16>
    tpu.vector_store %arg10[%c0_25, %c0_26], %41 {strides = array<i32>} : memref<16x128xbf16, #tpu.memory_space<vmem>>, vector<16x128xbf16>,
    return
  }
  func.func @transform_0(%arg0: i32) -> (i32, i32) {
    %c0_i32 = arith.constant 0 : i32
    %c0_i32_0 = arith.constant 0 : i32
    return %arg0, %c0_i32 : i32, i32
  }
  func.func @transform_1(%arg0: i32) -> (i32, i32) {
    %c0_i32 = arith.constant 0 : i32
    %c0_i32_0 = arith.constant 0 : i32
    %c0_i32_1 = arith.constant 0 : i32
    return %c0_i32, %c0_i32_0 : i32, i32
  }
  func.func @transform_2(%arg0: i32) -> (i32, i32) {
    %c0_i32 = arith.constant 0 : i32
    %c0_i32_0 = arith.constant 0 : i32
    %c0_i32_1 = arith.constant 0 : i32
    return %c0_i32, %c0_i32_0 : i32, i32
  }
  func.func @transform_3(%arg0: i32) -> (i32, i32) {
    %c0_i32 = arith.constant 0 : i32
    %c0_i32_0 = arith.constant 0 : i32
    %c0_i32_1 = arith.constant 0 : i32
    return %c0_i32, %c0_i32_0 : i32, i32
  }
  func.func @transform_4(%arg0: i32) -> (i32, i32) {
    %c0_i32 = arith.constant 0 : i32
    %c0_i32_0 = arith.constant 0 : i32
    %c0_i32_1 = arith.constant 0 : i32
    return %c0_i32, %c0_i32_0 : i32, i32
  }
  func.func @transform_5(%arg0: i32) -> (i32, i32) {
    %c0_i32 = arith.constant 0 : i32
    %c0_i32_0 = arith.constant 0 : i32
    %c0_i32_1 = arith.constant 0 : i32
    return %c0_i32, %c0_i32_0 : i32, i32
  }
  func.func @transform_6(%arg0: i32) -> (i32, i32) {
    %c0_i32 = arith.constant 0 : i32
    %c0_i32_0 = arith.constant 0 : i32
    %c0_i32_1 = arith.constant 0 : i32
    return %c0_i32, %c0_i32_0 : i32, i32
  }
  func.func @transform_7(%arg0: i32) -> (i32, i32) {
    %c0_i32 = arith.constant 0 : i32
    %c0_i32_0 = arith.constant 0 : i32
    %c0_i32_1 = arith.constant 0 : i32
    return %c0_i32, %c0_i32_0 : i32, i32
  }
  func.func @transform_8(%arg0: i32) -> (i32, i32) {
    %c0_i32 = arith.constant 0 : i32
    %c0_i32_0 = arith.constant 0 : i32
    %c0_i32_1 = arith.constant 0 : i32
    return %c0_i32, %c0_i32_0 : i32, i32
  }
  func.func @transform_9(%arg0: i32) -> (i32, i32) {
    %c0_i32 = arith.constant 0 : i32
    %c0_i32_0 = arith.constant 0 : i32
    return %arg0, %c0_i32 : i32, i32
  }
}

</mosaic_0001>

<llo_original>
// kernel: actor_forward.1
$region0: #{actor_forward.1}
  #allocation0 [shape = 'u32[]', space=smem, size = 0x4, offset = 0x4, fixed_abs, tag = 'smem constant byte address 0x4 - core index']
  #allocation1 [shape = 'u32[144,128]{1,0:T(1,128)}', space=vmem, size = 0x12000, scoped, tag = 'internal scratch']
  %s0 = inlined_call_operand.vmem [shape: f32[16,16], index: 0, kind: input, shape index: {}]
  %s1 = inlined_call_operand.vmem [shape: bf16[16,128], index: 1, kind: input, shape index: {}]
  %s2 = inlined_call_operand.vmem [shape: f32[1,128], index: 2, kind: input, shape index: {}]
  %s3 = inlined_call_operand.hbm [shape: bf16[128,128], index: 3, kind: input, shape index: {}]
  %s4 = inlined_call_operand.vmem [shape: f32[1,128], index: 4, kind: input, shape index: {}]
  %s5 = inlined_call_operand.hbm [shape: bf16[128,128], index: 5, kind: input, shape index: {}]
  %s6 = inlined_call_operand.vmem [shape: f32[1,128], index: 6, kind: input, shape index: {}]
  %s7 = inlined_call_operand.hbm [shape: bf16[128,128], index: 7, kind: input, shape index: {}]
  %s8 = inlined_call_operand.vmem [shape: f32[1,128], index: 8, kind: input, shape index: {}]
  %s9 = inlined_call_operand.vmem [shape: bf16[16,128], index: 9, kind: output, shape index: {}]
  %s10 = sld [smem:[#allocation0]]
  $region58: #{actor_forward.1} parent=0
    _
  %s12 = ssub.s32 1, %s10
  %s13 = scalar_select 0, %s12, %s10
  $region1: #{actor_forward.1} parent=0
    #allocation2 [shape = 'u8[32768]{0}', space=vmem, size = 0x8000, scoped, tag = 'input window, operand 3, single buffered']
    #allocation3 [shape = 's32[1]{0}', space=sflag, size = 0x4, scoped, tag = 'scoped memory for actor_forward.1']
    #allocation4 [shape = 'u8[32768]{0}', space=vmem, size = 0x8000, scoped, tag = 'input window, operand 5, single buffered']
    #allocation5 [shape = 's32[1]{0}', space=sflag, size = 0x4, scoped, tag = 'scoped memory for actor_forward.1']
    #allocation6 [shape = 'u8[32768]{0}', space=vmem, size = 0x8000, scoped, tag = 'input window, operand 7, single buffered']
    %14 = vsyncpa [#allocation3], 0
    %15 = vsyncpa [#allocation5], 0
    // Predicated region
    $region2: #{actor_forward.1} parent=1 // pred_check
      _
    $region3: #{actor_forward.1} parent=1 // pred_check_branch
      %17 = sbr.rel (0) target = $region5
    $region4: #{actor_forward.1} parent=1 // pred_region
      _
    $region5: #{actor_forward.1} parent=1 // pred_fallthru
      _
    // Predicated region
    $region6: #{actor_forward.1} parent=1 // pred_check
      _
    $region7: #{actor_forward.1} parent=1 // pred_check_branch
      %19 = sbr.rel (0) target = $region9
    $region8: #{actor_forward.1} parent=1 // pred_region
      _
    $region9: #{actor_forward.1} parent=1 // pred_fallthru
      _
    // Predicated region
    $region10: #{actor_forward.1} parent=1 // pred_check
      _
    $region11: #{actor_forward.1} parent=1 // pred_check_branch
      %21 = sbr.rel (0) target = $region13
    $region12: #{actor_forward.1} parent=1 // pred_region
      _
    $region13: #{actor_forward.1} parent=1 // pred_fallthru
      _
    // Predicated region
    $region14: #{actor_forward.1} parent=1 // pred_check
      _
    $region15: #{actor_forward.1} parent=1 // pred_check_branch
      %23 = sbr.rel (0) target = $region17
    $region16: #{actor_forward.1} parent=1 // pred_region
      %s25 = ssub.s32 1024, 1024
      %26 = vsyncadd [#allocation3], %s25
      %s27 = sshll.u32 [#allocation2], 4
      %s28 = int_to_ptr.vmem [resolvable:$true] %s27
      %33 = dma.hbm_to_vmem [thread:$0]  %s3, 1024, %s28, [#allocation3], 64, 64, 4
    $region17: #{actor_forward.1} parent=1 // pred_fallthru
      _
    // Predicated region
    $region18: #{actor_forward.1} parent=1 // pred_check
      _
    $region19: #{actor_forward.1} parent=1 // pred_check_branch
      %35 = sbr.rel (0) target = $region21
    $region20: #{actor_forward.1} parent=1 // pred_region
      _
    $region21: #{actor_forward.1} parent=1 // pred_fallthru
      _
    // Predicated region
    $region22: #{actor_forward.1} parent=1 // pred_check
      _
    $region23: #{actor_forward.1} parent=1 // pred_check_branch
      %37 = sbr.rel (0) target = $region25
    $region24: #{actor_forward.1} parent=1 // pred_region
      %s39 = ssub.s32 1024, 1024
      %40 = vsyncadd [#allocation5], %s39
      %s41 = sshll.u32 [#allocation4], 4
      %s42 = int_to_ptr.vmem [resolvable:$true] %s41
      %47 = dma.hbm_to_vmem [thread:$0]  %s5, 1024, %s42, [#allocation5], 64, 64, 4
    $region25: #{actor_forward.1} parent=1 // pred_fallthru
      _
    // Predicated region
    $region26: #{actor_forward.1} parent=1 // pred_check
      _
    $region27: #{actor_forward.1} parent=1 // pred_check_branch
      %49 = sbr.rel (0) target = $region29
    $region28: #{actor_forward.1} parent=1 // pred_region
      _
    $region29: #{actor_forward.1} parent=1 // pred_fallthru
      _
    // Predicated region
    $region30: #{actor_forward.1} parent=1 // pred_check
      _
    $region31: #{actor_forward.1} parent=1 // pred_check_branch
      %51 = sbr.rel (0) target = $region33
    $region32: #{actor_forward.1} parent=1 // pred_region
      %s53 = ssub.s32 1024, 1024
      %54 = vsyncadd [#allocation5], %s53
      %s55 = sshll.u32 [#allocation6], 4
      %s56 = int_to_ptr.vmem [resolvable:$true] %s55
      %61 = dma.hbm_to_vmem [thread:$0]  %s7, 1024, %s56, [#allocation5], 64, 64, 4
    $region33: #{actor_forward.1} parent=1 // pred_fallthru
      _
    // Predicated region
    $region34: #{actor_forward.1} parent=1 // pred_check
      _
    $region35: #{actor_forward.1} parent=1 // pred_check_branch
      %63 = sbr.rel (0) target = $region37
    $region36: #{actor_forward.1} parent=1 // pred_region
      _
    $region37: #{actor_forward.1} parent=1 // pred_fallthru
      _
    // Predicated region
    $region38: #{actor_forward.1} parent=1 // pred_check
      _
    $region39: #{actor_forward.1} parent=1 // pred_check_branch
      %65 = sbr.rel (0) target = $region41
    $region40: #{actor_forward.1} parent=1 // pred_region
      %66 = dma.done [#allocation3], 1024
    $region41: #{actor_forward.1} parent=1 // pred_fallthru
      _
    // Predicated region
    $region42: #{actor_forward.1} parent=1 // pred_check
      _
    $region43: #{actor_forward.1} parent=1 // pred_check_branch
      %68 = sbr.rel (0) target = $region45
    $region44: #{actor_forward.1} parent=1 // pred_region
      %69 = dma.done [#allocation5], 1024
    $region45: #{actor_forward.1} parent=1 // pred_fallthru
      _
    // Predicated region
    $region46: #{actor_forward.1} parent=1 // pred_check
      _
    $region47: #{actor_forward.1} parent=1 // pred_check_branch
      %71 = sbr.rel (0) target = $region49
    $region48: #{actor_forward.1} parent=1 // pred_region
      %72 = dma.done [#allocation5], 1024
    $region49: #{actor_forward.1} parent=1 // pred_fallthru
      _
    %v74 = vld [vmem:[%s0] sm:$0xff]
    %v75 = vld [vmem:[%s0 + $0x8] sm:$0xff]
    %v76 = vpack.c.bf16 %v75, %v74
    %v77 = vld [vmem:[%s1] sm:$0xf]
    %v78 = vld [vmem:[%s1 + $0x4] sm:$0xf]
    %v79 = vld [vmem:[%s2] sm:$0x1]
    %v81 = vlaneseq
    %v82 = vshrl.u32 %v81, 7
    %v83 = vsub.s32 0, %v82
    %v84 = vrot.slane %v79, %v83
    %v88 = vunpack.c.l.b16 %v77
    %v89 = vunpack.c.l.b16 %v78
    %v90 = vpack.c.b16 %v89, %v88
    %vm92 = vcmask 130048
    %v94 = vsel %vm92, %v76, 0
    %96 = vmatprep.subr.bf16.mxu0 0
    %97 = vmatpush1.bf16.msra.mxu0 %v90
    %98 = vmatprep.subr.bf16.mxu0 0
    %99 = vmatpush1.bf16.msra.mxu0 0
    %100 = vmatprep.subr.bf16.mxu0 0
    %101 = vmatpush1.bf16.msra.mxu0 0
    %102 = vmatprep.subr.bf16.mxu0 0
    %103 = vmatpush1.bf16.msra.mxu0 0
    %104 = vmatprep.subr.bf16.mxu0 0
    %105 = vmatpush1.bf16.msra.mxu0 0
    %106 = vmatprep.subr.bf16.mxu0 0
    %107 = vmatpush1.bf16.msra.mxu0 0
    %108 = vmatprep.subr.bf16.mxu0 0
    %109 = vmatpush1.bf16.msra.mxu0 0
    %110 = vmatprep.subr.bf16.mxu0 0
    %111 = vmatpush1.bf16.msra.mxu0 0
    %112 = vmatprep.subr.bf16.mxu0 0
    %113 = vmatpush1.bf16.msra.mxu0 0
    %114 = vmatprep.subr.bf16.mxu0 0
    %115 = vmatpush1.bf16.msra.mxu0 0
    %116 = vmatprep.subr.bf16.mxu0 0
    %117 = vmatpush1.bf16.msra.mxu0 0
    %118 = vmatprep.subr.bf16.mxu0 0
    %119 = vmatpush1.bf16.msra.mxu0 0
    %120 = vmatprep.subr.bf16.mxu0 0
    %121 = vmatpush1.bf16.msra.mxu0 0
    %122 = vmatprep.subr.bf16.mxu0 0
    %123 = vmatpush1.bf16.msra.mxu0 0
    %124 = vmatprep.subr.bf16.mxu0 0
    %125 = vmatpush1.bf16.msra.mxu0 0
    %126 = vmatprep.subr.bf16.mxu0 0
    %127 = vmatpush1.bf16.msra.mxu0 0
    %128 = vmatprep.mubr.bf16.mxu0 0
    %129 = vmatmul.mubr.bf16.gmra.mrb[0].mxu0 %v94
    %v130 = vpop.f32.mrb[0].mxu0
    %v131 = vadd.f32 %v84, %v130
    %v132 = vpop.f32.mrb[0].mxu0
    %v133 = vpop.f32.mrb[0].mxu0
    %v134 = vadd.f32 %v84, %v133
    %v135 = vpop.f32.mrb[0].mxu0
    %136 = vdwg.mxu0
    %v137 = vmax.f32 %v131, 0.0
    %v138 = vmax.f32 %v134, 0.0
    %v139 = vpack.c.bf16 %v138, %v137
    %v140 = vld [vmem:[#allocation2] sm:$0xf]
    %v141 = vld [vmem:[#allocation2 + $0x4] sm:$0xf]
    %v142 = vld [vmem:[#allocation2 + $0x8] sm:$0xf]
    %v143 = vld [vmem:[#allocation2 + $0xc] sm:$0xf]
    %v144 = vld [vmem:[#allocation2 + $0x10] sm:$0xf]
    %v145 = vld [vmem:[#allocation2 + $0x14] sm:$0xf]
    %v146 = vld [vmem:[#allocation2 + $0x18] sm:$0xf]
    %v147 = vld [vmem:[#allocation2 + $0x1c] sm:$0xf]
    %v148 = vld [vmem:[#allocation2 + $0x20] sm:$0xf]
    %v149 = vld [vmem:[#allocation2 + $0x24] sm:$0xf]
    %v150 = vld [vmem:[#allocation2 + $0x28] sm:$0xf]
    %v151 = vld [vmem:[#allocation2 + $0x2c] sm:$0xf]
    %v152 = vld [vmem:[#allocation2 + $0x30] sm:$0xf]
    %v153 = vld [vmem:[#allocation2 + $0x34] sm:$0xf]
    %v154 = vld [vmem:[#allocation2 + $0x38] sm:$0xf]
    %v155 = vld [vmem:[#allocation2 + $0x3c] sm:$0xf]
    %v156 = vld [vmem:[%s4] sm:$0x1]
    %v158 = vlaneseq
    %v159 = vshrl.u32 %v158, 7
    %v160 = vsub.s32 0, %v159
    %v161 = vrot.slane %v156, %v160
    %v179 = vunpack.c.l.b16 %v140
    %v180 = vunpack.c.l.b16 %v141
    %v181 = vunpack.c.l.b16 %v142
    %v182 = vunpack.c.l.b16 %v143
    %v183 = vunpack.c.l.b16 %v144
    %v184 = vunpack.c.l.b16 %v145
    %v185 = vunpack.c.l.b16 %v146
    %v186 = vunpack.c.l.b16 %v147
    %v187 = vunpack.c.l.b16 %v148
    %v188 = vunpack.c.l.b16 %v149
    %v189 = vunpack.c.l.b16 %v150
    %v190 = vunpack.c.l.b16 %v151
    %v191 = vunpack.c.l.b16 %v152
    %v192 = vunpack.c.l.b16 %v153
    %v193 = vunpack.c.l.b16 %v154
    %v194 = vunpack.c.l.b16 %v155
    %v195 = vpack.c.b16 %v180, %v179
    %v196 = vpack.c.b16 %v182, %v181
    %v197 = vpack.c.b16 %v184, %v183
    %v198 = vpack.c.b16 %v186, %v185
    %v199 = vpack.c.b16 %v188, %v187
    %v200 = vpack.c.b16 %v190, %v189
    %v201 = vpack.c.b16 %v192, %v191
    %v202 = vpack.c.b16 %v194, %v193
    %211 = vmatprep.subr.bf16.mxu0 0
    %212 = vmatpush1.bf16.msra.mxu0 %v195
    %213 = vmatprep.subr.bf16.mxu0 0
    %214 = vmatpush1.bf16.msra.mxu0 %v196
    %215 = vmatprep.subr.bf16.mxu0 0
    %216 = vmatpush1.bf16.msra.mxu0 %v197
    %217 = vmatprep.subr.bf16.mxu0 0
    %218 = vmatpush1.bf16.msra.mxu0 %v198
    %219 = vmatprep.subr.bf16.mxu0 0
    %220 = vmatpush1.bf16.msra.mxu0 %v199
    %221 = vmatprep.subr.bf16.mxu0 0
    %222 = vmatpush1.bf16.msra.mxu0 %v200
    %223 = vmatprep.subr.bf16.mxu0 0
    %224 = vmatpush1.bf16.msra.mxu0 %v201
    %225 = vmatprep.subr.bf16.mxu0 0
    %226 = vmatpush1.bf16.msra.mxu0 %v202
    %227 = vmatprep.subr.bf16.mxu0 0
    %228 = vmatpush1.bf16.msra.mxu0 0
    %229 = vmatprep.subr.bf16.mxu0 0
    %230 = vmatpush1.bf16.msra.mxu0 0
    %231 = vmatprep.subr.bf16.mxu0 0
    %232 = vmatpush1.bf16.msra.mxu0 0
    %233 = vmatprep.subr.bf16.mxu0 0
    %234 = vmatpush1.bf16.msra.mxu0 0
    %235 = vmatprep.subr.bf16.mxu0 0
    %236 = vmatpush1.bf16.msra.mxu0 0
    %237 = vmatprep.subr.bf16.mxu0 0
    %238 = vmatpush1.bf16.msra.mxu0 0
    %239 = vmatprep.subr.bf16.mxu0 0
    %240 = vmatpush1.bf16.msra.mxu0 0
    %241 = vmatprep.subr.bf16.mxu0 0
    %242 = vmatpush1.bf16.msra.mxu0 0
    %243 = vmatprep.mubr.bf16.mxu0 0
    %244 = vmatmul.mubr.bf16.gmra.mrb[0].mxu0 %v139
    %v245 = vpop.f32.mrb[0].mxu0
    %v246 = vadd.f32 %v161, %v245
    %v247 = vpop.f32.mrb[0].mxu0
    %v248 = vpop.f32.mrb[0].mxu0
    %v249 = vadd.f32 %v161, %v248
    %v250 = vpop.f32.mrb[0].mxu0
    %251 = vdwg.mxu0
    %v252 = vmax.f32 %v246, 0.0
    %v253 = vmax.f32 %v249, 0.0
    %v254 = vpack.c.bf16 %v253, %v252
    %v255 = vld [vmem:[#allocation4] sm:$0xf]
    %v256 = vld [vmem:[#allocation4 + $0x4] sm:$0xf]
    %v257 = vld [vmem:[#allocation4 + $0x8] sm:$0xf]
    %v258 = vld [vmem:[#allocation4 + $0xc] sm:$0xf]
    %v259 = vld [vmem:[#allocation4 + $0x10] sm:$0xf]
    %v260 = vld [vmem:[#allocation4 + $0x14] sm:$0xf]
    %v261 = vld [vmem:[#allocation4 + $0x18] sm:$0xf]
    %v262 = vld [vmem:[#allocation4 + $0x1c] sm:$0xf]
    %v263 = vld [vmem:[#allocation4 + $0x20] sm:$0xf]
    %v264 = vld [vmem:[#allocation4 + $0x24] sm:$0xf]
    %v265 = vld [vmem:[#allocation4 + $0x28] sm:$0xf]
    %v266 = vld [vmem:[#allocation4 + $0x2c] sm:$0xf]
    %v267 = vld [vmem:[#allocation4 + $0x30] sm:$0xf]
    %v268 = vld [vmem:[#allocation4 + $0x34] sm:$0xf]
    %v269 = vld [vmem:[#allocation4 + $0x38] sm:$0xf]
    %v270 = vld [vmem:[#allocation4 + $0x3c] sm:$0xf]
    %v271 = vld [vmem:[%s6] sm:$0x1]
    %v273 = vlaneseq
    %v274 = vshrl.u32 %v273, 7
    %v275 = vsub.s32 0, %v274
    %v276 = vrot.slane %v271, %v275
    %v294 = vunpack.c.l.b16 %v255
    %v295 = vunpack.c.l.b16 %v256
    %v296 = vunpack.c.l.b16 %v257
    %v297 = vunpack.c.l.b16 %v258
    %v298 = vunpack.c.l.b16 %v259
    %v299 = vunpack.c.l.b16 %v260
    %v300 = vunpack.c.l.b16 %v261
    %v301 = vunpack.c.l.b16 %v262
    %v302 = vunpack.c.l.b16 %v263
    %v303 = vunpack.c.l.b16 %v264
    %v304 = vunpack.c.l.b16 %v265
    %v305 = vunpack.c.l.b16 %v266
    %v306 = vunpack.c.l.b16 %v267
    %v307 = vunpack.c.l.b16 %v268
    %v308 = vunpack.c.l.b16 %v269
    %v309 = vunpack.c.l.b16 %v270
    %v310 = vpack.c.b16 %v295, %v294
    %v311 = vpack.c.b16 %v297, %v296
    %v312 = vpack.c.b16 %v299, %v298
    %v313 = vpack.c.b16 %v301, %v300
    %v314 = vpack.c.b16 %v303, %v302
    %v315 = vpack.c.b16 %v305, %v304
    %v316 = vpack.c.b16 %v307, %v306
    %v317 = vpack.c.b16 %v309, %v308
    %326 = vmatprep.subr.bf16.mxu0 0
    %327 = vmatpush1.bf16.msra.mxu0 %v310
    %328 = vmatprep.subr.bf16.mxu0 0
    %329 = vmatpush1.bf16.msra.mxu0 %v311
    %330 = vmatprep.subr.bf16.mxu0 0
    %331 = vmatpush1.bf16.msra.mxu0 %v312
    %332 = vmatprep.subr.bf16.mxu0 0
    %333 = vmatpush1.bf16.msra.mxu0 %v313
    %334 = vmatprep.subr.bf16.mxu0 0
    %335 = vmatpush1.bf16.msra.mxu0 %v314
    %336 = vmatprep.subr.bf16.mxu0 0
    %337 = vmatpush1.bf16.msra.mxu0 %v315
    %338 = vmatprep.subr.bf16.mxu0 0
    %339 = vmatpush1.bf16.msra.mxu0 %v316
    %340 = vmatprep.subr.bf16.mxu0 0
    %341 = vmatpush1.bf16.msra.mxu0 %v317
    %342 = vmatprep.subr.bf16.mxu0 0
    %343 = vmatpush1.bf16.msra.mxu0 0
    %344 = vmatprep.subr.bf16.mxu0 0
    %345 = vmatpush1.bf16.msra.mxu0 0
    %346 = vmatprep.subr.bf16.mxu0 0
    %347 = vmatpush1.bf16.msra.mxu0 0
    %348 = vmatprep.subr.bf16.mxu0 0
    %349 = vmatpush1.bf16.msra.mxu0 0
    %350 = vmatprep.subr.bf16.mxu0 0
    %351 = vmatpush1.bf16.msra.mxu0 0
    %352 = vmatprep.subr.bf16.mxu0 0
    %353 = vmatpush1.bf16.msra.mxu0 0
    %354 = vmatprep.subr.bf16.mxu0 0
    %355 = vmatpush1.bf16.msra.mxu0 0
    %356 = vmatprep.subr.bf16.mxu0 0
    %357 = vmatpush1.bf16.msra.mxu0 0
    %358 = vmatprep.mubr.bf16.mxu0 0
    %359 = vmatmul.mubr.bf16.gmra.mrb[0].mxu0 %v254
    %v360 = vpop.f32.mrb[0].mxu0
    %v361 = vadd.f32 %v276, %v360
    %v362 = vpop.f32.mrb[0].mxu0
    %v363 = vpop.f32.mrb[0].mxu0
    %v364 = vadd.f32 %v276, %v363
    %v365 = vpop.f32.mrb[0].mxu0
    %366 = vdwg.mxu0
    %v367 = vmax.f32 %v361, 0.0
    %v368 = vmax.f32 %v364, 0.0
    %v369 = vpack.c.bf16 %v368, %v367
    %v370 = vld [vmem:[#allocation6] sm:$0xf]
    %v371 = vld [vmem:[#allocation6 + $0x4] sm:$0xf]
    %v372 = vld [vmem:[#allocation6 + $0x8] sm:$0xf]
    %v373 = vld [vmem:[#allocation6 + $0xc] sm:$0xf]
    %v374 = vld [vmem:[#allocation6 + $0x10] sm:$0xf]
    %v375 = vld [vmem:[#allocation6 + $0x14] sm:$0xf]
    %v376 = vld [vmem:[#allocation6 + $0x18] sm:$0xf]
    %v377 = vld [vmem:[#allocation6 + $0x1c] sm:$0xf]
    %v378 = vld [vmem:[#allocation6 + $0x20] sm:$0xf]
    %v379 = vld [vmem:[#allocation6 + $0x24] sm:$0xf]
    %v380 = vld [vmem:[#allocation6 + $0x28] sm:$0xf]
    %v381 = vld [vmem:[#allocation6 + $0x2c] sm:$0xf]
    %v382 = vld [vmem:[#allocation6 + $0x30] sm:$0xf]
    %v383 = vld [vmem:[#allocation6 + $0x34] sm:$0xf]
    %v384 = vld [vmem:[#allocation6 + $0x38] sm:$0xf]
    %v385 = vld [vmem:[#allocation6 + $0x3c] sm:$0xf]
    %v386 = vld [vmem:[%s8] sm:$0x1]
    %v388 = vlaneseq
    %v389 = vshrl.u32 %v388, 7
    %v390 = vsub.s32 0, %v389
    %v391 = vrot.slane %v386, %v390
    %v409 = vunpack.c.l.b16 %v370
    %v410 = vunpack.c.l.b16 %v371
    %v411 = vunpack.c.l.b16 %v372
    %v412 = vunpack.c.l.b16 %v373
    %v413 = vunpack.c.l.b16 %v374
    %v414 = vunpack.c.l.b16 %v375
    %v415 = vunpack.c.l.b16 %v376
    %v416 = vunpack.c.l.b16 %v377
    %v417 = vunpack.c.l.b16 %v378
    %v418 = vunpack.c.l.b16 %v379
    %v419 = vunpack.c.l.b16 %v380
    %v420 = vunpack.c.l.b16 %v381
    %v421 = vunpack.c.l.b16 %v382
    %v422 = vunpack.c.l.b16 %v383
    %v423 = vunpack.c.l.b16 %v384
    %v424 = vunpack.c.l.b16 %v385
    %v425 = vpack.c.b16 %v410, %v409
    %v426 = vpack.c.b16 %v412, %v411
    %v427 = vpack.c.b16 %v414, %v413
    %v428 = vpack.c.b16 %v416, %v415
    %v429 = vpack.c.b16 %v418, %v417
    %v430 = vpack.c.b16 %v420, %v419
    %v431 = vpack.c.b16 %v422, %v421
    %v432 = vpack.c.b16 %v424, %v423
    %441 = vmatprep.subr.bf16.mxu0 0
    %442 = vmatpush1.bf16.msra.mxu0 %v425
    %443 = vmatprep.subr.bf16.mxu0 0
    %444 = vmatpush1.bf16.msra.mxu0 %v426
    %445 = vmatprep.subr.bf16.mxu0 0
    %446 = vmatpush1.bf16.msra.mxu0 %v427
    %447 = vmatprep.subr.bf16.mxu0 0
    %448 = vmatpush1.bf16.msra.mxu0 %v428
    %449 = vmatprep.subr.bf16.mxu0 0
    %450 = vmatpush1.bf16.msra.mxu0 %v429
    %451 = vmatprep.subr.bf16.mxu0 0
    %452 = vmatpush1.bf16.msra.mxu0 %v430
    %453 = vmatprep.subr.bf16.mxu0 0
    %454 = vmatpush1.bf16.msra.mxu0 %v431
    %455 = vmatprep.subr.bf16.mxu0 0
    %456 = vmatpush1.bf16.msra.mxu0 %v432
    %457 = vmatprep.subr.bf16.mxu0 0
    %458 = vmatpush1.bf16.msra.mxu0 0
    %459 = vmatprep.subr.bf16.mxu0 0
    %460 = vmatpush1.bf16.msra.mxu0 0
    %461 = vmatprep.subr.bf16.mxu0 0
    %462 = vmatpush1.bf16.msra.mxu0 0
    %463 = vmatprep.subr.bf16.mxu0 0
    %464 = vmatpush1.bf16.msra.mxu0 0
    %465 = vmatprep.subr.bf16.mxu0 0
    %466 = vmatpush1.bf16.msra.mxu0 0
    %467 = vmatprep.subr.bf16.mxu0 0
    %468 = vmatpush1.bf16.msra.mxu0 0
    %469 = vmatprep.subr.bf16.mxu0 0
    %470 = vmatpush1.bf16.msra.mxu0 0
    %471 = vmatprep.subr.bf16.mxu0 0
    %472 = vmatpush1.bf16.msra.mxu0 0
    %473 = vmatprep.mubr.bf16.mxu0 0
    %474 = vmatmul.mubr.bf16.gmra.mrb[0].mxu0 %v369
    %v475 = vpop.f32.mrb[0].mxu0
    %v476 = vadd.f32 %v391, %v475
    %v477 = vpop.f32.mrb[0].mxu0
    %v478 = vpop.f32.mrb[0].mxu0
    %v479 = vadd.f32 %v391, %v478
    %v480 = vpop.f32.mrb[0].mxu0
    %481 = vdwg.mxu0
    %482 = vmax.xlane.f32.xlu0 %v476
    %v483 = vpop.xlane.xlu0 %482
    %484 = vmax.xlane.f32.xlu0 %v479
    %v485 = vpop.xlane.xlu0 %484
    %v486 = vsub.f32 %v476, %v483
    %v487 = vsub.f32 %v479, %v485
    %v488 = vmul.f32 %v486, 1.442695
    %v489 = vpow.pop %v488
    %v490 = vmul.f32 %v487, 1.442695
    %v491 = vpow.pop %v490
    %492 = vadd.xlane.f32.xlu0 %v489
    %v493 = vpop.xlane.xlu0 %492
    %494 = vadd.xlane.f32.xlu0 %v491
    %v495 = vpop.xlane.xlu0 %494
    %v496 = vrcp.pop %v493
    %v497 = vrcp.pop %v495
    %v498 = vmul.f32 %v489, %v496
    %v499 = vmul.f32 %v491, %v497
    %v500 = vpack.c.bf16 %v499, %v498
    %v502 = vunpack.c.l.b16 %v500
    %v503 = vunpack.c.h.b16 %v500
    %v504 = vpack.c.b16 %v502, %v502
    %v505 = vpack.c.b16 %v503, %v503
    %508 = vst [vmem:[%s9] sm:$0xf] %v504
    %509 = vst [vmem:[%s9 + $0x4] sm:$0xf] %v505
    // Predicated region
    $region50: #{actor_forward.1} parent=1 // pred_check
      _
    $region51: #{actor_forward.1} parent=1 // pred_check_branch
      %511 = sbr.rel (0) target = $region53
    $region52: #{actor_forward.1} parent=1 // pred_region
      _
    $region53: #{actor_forward.1} parent=1 // pred_fallthru
      _
    // Predicated region
    $region54: #{actor_forward.1} parent=1 // pred_check
      _
    $region55: #{actor_forward.1} parent=1 // pred_check_branch
      %513 = sbr.rel (0) target = $region57
    $region56: #{actor_forward.1} parent=1 // pred_region
      _
    $region57: #{actor_forward.1} parent=1 // pred_fallthru
      _
    %514 = vsyncpa [#allocation3], 1
    %515 = vsyncpa [#allocation5], 1

</llo_original>
